<compile_context>
chip_gen: v7x
topology: tpu7x:2x2x1
jax: 0.10.0
libtpu: 0.0.40
codegen_flags: <defaults>
</compile_context>

<pallas_src>
import functools

import jax
import jax.numpy as jnp
from jax.experimental import pallas as pl
from jax.experimental.pallas import tpu as pltpu


def _round_up(a, m):
    return (a + m - 1) // m * m


def _cdiv(a, b):
    return -(-a // b)


def _channel_pruning_kernel(x_ref, w_ref, b_ref, out_ref, acc_ref, *,
                            c_out, slicing_rate, keep_m):
    # x_ref:   (tb, C_in, hw_block)  -- one zero-padded slab of x
    # w_ref:   (C_in, C_out)         -- gate.weight[:, :C_in].T / (H*W)
    # b_ref:   (1, C_out)            -- gate.bias + rate * gate.weight[:, C_in]
    # out_ref: (tb, C_out)           -- resident across the H*W grid axis
    # acc_ref: (tb, C_in) f32 VMEM scratch -- running sum of |x| over H*W
    h = pl.program_id(1)

    @pl.when(h == 0)
    def _init():
        acc_ref[...] = jnp.zeros_like(acc_ref)

    # Hot path: pure VPU/XLU reduction; the HBM->VMEM DMA of the next slab is
    # overlapped by BlockSpec double-buffering (memory-bound regime).
    acc_ref[...] += jnp.sum(jnp.abs(x_ref[...].astype(jnp.float32)), axis=-1)

    @pl.when(h == pl.num_programs(1) - 1)
    def _finalize():
        # g = relu(gate(cat([mean|x|, rate]))); the 1/(H*W) factor and the
        # constant rate feature are folded into w_ref / b_ref by the wrapper.
        s = acc_ref[...]
        g = jnp.dot(s, w_ref[...], preferred_element_type=jnp.float32) + b_ref[...]
        g = jnp.maximum(g, 0.0)

        col = jax.lax.broadcasted_iota(jnp.int32, g.shape, 1)
        not_sliced = col >= slicing_rate
        # g = g * slicing  (zero out the first slicing_rate columns), exactly
        # matching the reference even in degenerate all-zero rows.
        g = jnp.where(not_sliced, g, 0.0)
        # Sliced columns sit at -1 so they can never win the max (g >= 0).
        rem0 = jnp.where(not_sliced, g, -1.0)

        # torch: idx = (-g).topk(k, 1)[1]; t = g.scatter(1, idx, 0)
        # == keep only the (C_out - k) largest entries per row.
        def body(_, carry):
            rem, keep = carry
            mx = jnp.max(rem, axis=1, keepdims=True)
            sel = jnp.min(jnp.where(rem == mx, col, c_out), axis=1, keepdims=True)
            onehot = col == sel
            keep = jnp.where(onehot, g, keep)
            rem = jnp.where(onehot, -1.0, rem)
            return rem, keep

        _, keep = jax.lax.fori_loop(0, keep_m, body,
                                    (rem0, jnp.zeros_like(g)), unroll=True)

        # t = t / (sum(t, 1) + 1e-12) * C_out  -- exact divide, finalize-only.
        denom = jnp.sum(keep, axis=1, keepdims=True) + 1e-12
        out_ref[...] = (keep / denom * float(c_out)).astype(out_ref.dtype)


def channel_pruning(x, weight, bias, rate=0.95, *, hw_block_max=8192,
                    tile_bytes_target=6 * 1024 * 1024):
    """Forward pass of ChannelPruning (rate is fixed to 0.95 in __init__).

    x:      (B, C_in, H, W) float (NCHW, as in PyTorch)
    weight: (C_out, C_in + 1) float32 (gate.weight)
    bias:   (C_out,) float32          (gate.bias)
    returns mask of shape (B, C_out, 1, 1)
    """
    B, c_in, H, W = x.shape
    c_out = weight.shape[0]
    k = int(c_out * rate)
    slicing_rate = int(c_out * rate) if rate <= 0.75 else int(c_out * 0.75)
    keep_m = c_out - k
    HW = H * W

    if rate <= 0.75:
        # Data-independent constant mask branch; no kernel needed.
        col = jnp.arange(c_in)
        slicing = (col >= slicing_rate).astype(jnp.float32)
        return jnp.broadcast_to(slicing[None, :, None, None], (B, c_in, 1, 1))

    # --- tiling choices -------------------------------------------------------
    itemsize = jnp.dtype(x.dtype).itemsize
    # Leave room for the resident gate weight/bias inside the x-tile budget.
    w_bytes = (c_in * c_out + c_out) * 4
    x_budget = max(512 * 1024, int(tile_bytes_target) - 2 * w_bytes)

    # H*W lane blocks: split round_up(HW, 128) into n_hw near-equal 128-aligned
    # chunks so zero-padding (which is exact for sum|x|) stays minimal.
    hw_full = _round_up(HW, 128)
    tb0 = min(B, 8)
    desired_hw = max(128, min(hw_block_max,
                              (x_budget // max(tb0 * c_in * itemsize, 1)) // 128 * 128,
                              hw_full))
    n_hw = _cdiv(hw_full, desired_hw)
    hw_block = _round_up(_cdiv(hw_full, n_hw), 128)
    HW_pad = hw_block * n_hw

    # Batch tiles: near-even split of B, grown when H*W is small so each grid
    # step still moves a few MiB (amortizes per-step overhead).
    bytes_per_row = c_in * hw_block * itemsize
    desired_tb = max(1, min(B, 512, max(tb0, x_budget // max(bytes_per_row, 1))))
    n_b = _cdiv(B, desired_tb)
    tb = _cdiv(B, n_b)
    B_pad = tb * n_b

    # --- wrapper-side constant folding / padding ------------------------------
    x_flat = x.reshape(B, c_in, HW)
    if B_pad != B or HW_pad != HW:
        # Zero padding is exact: it adds nothing to sum(|x|); padded batch rows
        # are sliced off below.
        x_flat = jnp.pad(x_flat, ((0, B_pad - B), (0, 0), (0, HW_pad - HW)))

    w_scaled = (weight[:, :c_in].T / float(HW)).astype(jnp.float32)       # (C_in, C_out)
    bias_eff = (bias + rate * weight[:, c_in]).reshape(1, c_out).astype(jnp.float32)

    kernel = functools.partial(_channel_pruning_kernel, c_out=c_out,
                               slicing_rate=slicing_rate, keep_m=keep_m)

    t = pl.pallas_call(
        kernel,
        out_shape=jax.ShapeDtypeStruct((B_pad, c_out), jnp.float32),
        grid_spec=pltpu.PrefetchScalarGridSpec(
            num_scalar_prefetch=0,
            grid=(B_pad // tb, HW_pad // hw_block),
            in_specs=[
                pl.BlockSpec((tb, c_in, hw_block), lambda b, h: (b, 0, h)),
                pl.BlockSpec((c_in, c_out), lambda b, h: (0, 0)),   # stays in VMEM
                pl.BlockSpec((1, c_out), lambda b, h: (0, 0)),      # stays in VMEM
            ],
            out_specs=pl.BlockSpec((tb, c_out), lambda b, h: (b, 0)),
            scratch_shapes=[pltpu.VMEM((tb, c_in), jnp.float32)],
        ),
        compiler_params=pltpu.CompilerParams(
            dimension_semantics=("parallel", "arbitrary"),
            vmem_limit_bytes=32 * 1024 * 1024,
        ),
    )(x_flat, w_scaled, bias_eff)

    return t[:B].reshape(B, c_out, 1, 1)
    # TODO(synk): self.loss (training-only L1 norm of g) and the numpy
    # self.count_channel stateful counter are host-side side effects not
    # reproduced here.


def _reference(x, weight, bias, rate=0.95):
    """Pure-JAX reference mirroring the PyTorch forward (rate > 0.75 branch)."""
    B, c_in, H, W = x.shape
    c_out = weight.shape[0]
    k = int(c_out * rate)
    slicing_rate = int(c_out * rate) if rate <= 0.75 else int(c_out * 0.75)
    s = jnp.mean(jnp.abs(x.reshape(B, c_in, -1).astype(jnp.float32)), axis=-1)
    s_aug = jnp.concatenate([s, jnp.full((B, 1), rate, jnp.float32)], axis=1)
    g = jnp.maximum(s_aug @ weight.T + bias, 0.0)
    col = jnp.arange(c_out)[None, :]
    g = g * (col >= slicing_rate).astype(jnp.float32)
    keep_m = c_out - k
    rem, keep = jnp.where(col >= slicing_rate, g, -1.0), jnp.zeros_like(g)
    for _ in range(keep_m):
        mx = jnp.max(rem, axis=1, keepdims=True)
        sel = jnp.min(jnp.where(rem == mx, col, c_out), axis=1, keepdims=True)
        onehot = col == sel
        keep = jnp.where(onehot, g, keep)
        rem = jnp.where(onehot, -1.0, rem)
    t = keep / (jnp.sum(keep, axis=1, keepdims=True) + 1e-12) * c_out
    return t.reshape(B, c_out, 1, 1)


if __name__ == "__main__":
    def _check(B, C, H, W, seed, **kw):
        key = jax.random.PRNGKey(seed)
        kx, kw_ = jax.random.split(key)
        x = jax.random.normal(kx, (B, C, H, W), dtype=jnp.float32)
        # Mirror the PyTorch init: kaiming_normal_ weight, bias = 1.
        fan_in = C + 1
        weight = jax.random.normal(kw_, (C, C + 1), dtype=jnp.float32) * (2.0 / fan_in) ** 0.5
        bias = jnp.ones((C,), dtype=jnp.float32)

        mask = jax.block_until_ready(channel_pruning(x, weight, bias, **kw))
        assert mask.shape == (B, C, 1, 1)
        assert bool(jnp.all(jnp.isfinite(mask)))

        ref = jax.block_until_ready(_reference(x, weight, bias))
        # Zero/non-zero support of the pruning mask must match exactly; values
        # now match tightly thanks to the exact finalize division.
        assert bool(jnp.all((mask != 0.0) == (ref != 0.0))), "support mismatch"
        assert bool(jnp.allclose(mask, ref, rtol=1e-4, atol=1e-4)), "value mismatch"

    # Small primary shape (single grid step per axis).
    _check(B=2, C=16, H=16, W=16, seed=0)
    # Multi-step H*W accumulation: exercises the pl.when init/finalize gating,
    # the balanced 128-aligned hw split, and zero-padding of the last slab.
    _check(B=3, C=16, H=48, W=48, seed=1, hw_block_max=512)
    # Multiple batch tiles with a padded batch row (B=11 -> tiles of 6).
    _check(B=11, C=16, H=8, W=8, seed=2, tile_bytes_target=4096)

    print("KERNEL_OK")
</pallas_src>

<mosaic_0001>
module attributes {stable_mosaic.version = 11 : i64} {
  func.func @_channel_pruning_kernel(%arg0: i32, %arg1: i32, %arg2: memref<2x16x256xf32, #tpu.memory_space<vmem>>, %arg3: memref<16x16xf32, #tpu.memory_space<vmem>>, %arg4: memref<1x16xf32, #tpu.memory_space<vmem>>, %arg5: memref<2x16xf32, #tpu.memory_space<vmem>>, %arg6: memref<2x16xf32, #tpu.memory_space<vmem>>) attributes {dimension_semantics = [#tpu.dimension_semantics<parallel>, #tpu.dimension_semantics<arbitrary>], iteration_bounds = array<i64: 1, 1>, scalar_prefetch = 0 : i64, scratch_operands = 1 : i64, tpu.core_type = #tpu.core_type<tc>, window_params = [{transform_indices = @transform_0, window_bounds = array<i64: 2, 16, 256>}, {pipeline_mode = #tpu.pipeline_mode<synchronous>, transform_indices = @transform_1, window_bounds = array<i64: 16, 16>}, {pipeline_mode = #tpu.pipeline_mode<synchronous>, transform_indices = @transform_2, window_bounds = array<i64: 1, 16>}, {transform_indices = @transform_3, window_bounds = array<i64: 2, 16>}]} {
    %c0_i32 = arith.constant 0 : i32
    %0 = arith.cmpi eq, %arg1, %c0_i32 : i32
    %1 = arith.extui %0 : i1 to i32
    %c0_i32_0 = arith.constant 0 : i32
    %2 = arith.cmpi ne, %1, %c0_i32_0 : i32
    scf.if %2 {
      %cst_9 = arith.constant 0.000000e+00 : f32
      %12 = vector.broadcast %cst_9 : f32 to vector<2x16xf32>
      %c0_10 = arith.constant 0 : index
      %c0_11 = arith.constant 0 : index
      %13 = vector.load %arg6[%c0_10, %c0_11] : memref<2x16xf32, #tpu.memory_space<vmem>>, vector<2x16xf32>
      tpu.vector_store %arg6[%c0_10, %c0_11], %12 {strides = array<i32>} : memref<2x16xf32, #tpu.memory_space<vmem>>, vector<2x16xf32>,
    } else {
    }
    %c0 = arith.constant 0 : index
    %c0_1 = arith.constant 0 : index
    %3 = vector.load %arg6[%c0, %c0_1] : memref<2x16xf32, #tpu.memory_space<vmem>>, vector<2x16xf32>
    %c0_2 = arith.constant 0 : index
    %c0_3 = arith.constant 0 : index
    %c0_4 = arith.constant 0 : index
    %4 = vector.load %arg2[%c0_2, %c0_3, %c0_4] : memref<2x16x256xf32, #tpu.memory_space<vmem>>, vector<2x16x256xf32>
    %5 = math.absf %4 : vector<2x16x256xf32>
    %cst = arith.constant dense<0.000000e+00> : vector<2x16xf32>
    %6 = vector.multi_reduction <add>, %5, %cst [2] : vector<2x16x256xf32> to vector<2x16xf32>
    %7 = arith.addf %3, %6 : vector<2x16xf32>
    %c0_5 = arith.constant 0 : index
    %c0_6 = arith.constant 0 : index
    %8 = vector.load %arg6[%c0_5, %c0_6] : memref<2x16xf32, #tpu.memory_space<vmem>>, vector<2x16xf32>
    tpu.vector_store %arg6[%c0_5, %c0_6], %7 {strides = array<i32>} : memref<2x16xf32, #tpu.memory_space<vmem>>, vector<2x16xf32>,
    %c0_i32_7 = arith.constant 0 : i32
    %9 = arith.cmpi eq, %arg1, %c0_i32_7 : i32
    %10 = arith.extui %9 : i1 to i32
    %c0_i32_8 = arith.constant 0 : i32
    %11 = arith.cmpi ne, %10, %c0_i32_8 : i32
    scf.if %11 {
      %c0_9 = arith.constant 0 : index
      %c0_10 = arith.constant 0 : index
      %12 = vector.load %arg6[%c0_9, %c0_10] : memref<2x16xf32, #tpu.memory_space<vmem>>, vector<2x16xf32>
      %c0_11 = arith.constant 0 : index
      %c0_12 = arith.constant 0 : index
      %13 = vector.load %arg3[%c0_11, %c0_12] : memref<16x16xf32, #tpu.memory_space<vmem>>, vector<16x16xf32>
      %cst_13 = arith.constant dense<0.000000e+00> : vector<2x16xf32>
      %14 = tpu.matmul %12, %13, %cst_13 {dimension_numbers = #tpu.dot_dimension_numbers<[1], [0], [0], [1], [0, 0, 1, 1], [], []>} : vector<2x16xf32>, vector<16x16xf32>, vector<2x16xf32> -> vector<2x16xf32>
      %c0_14 = arith.constant 0 : index
      %c0_15 = arith.constant 0 : index
      %15 = vector.load %arg4[%c0_14, %c0_15] : memref<1x16xf32, #tpu.memory_space<vmem>>, vector<1x16xf32>
      %16 = vector.broadcast %15 : vector<1x16xf32> to vector<2x16xf32>
      %17 = arith.addf %14, %16 : vector<2x16xf32>
      %cst_16 = arith.constant 0.000000e+00 : f32
      %18 = vector.broadcast %cst_16 : f32 to vector<2x16xf32>
      %19 = arith.maximumf %17, %18 : vector<2x16xf32>
      %20 = tpu.iota {dimensions = array<i32: 1>} : vector<2x16xi32>
      %c12_i32 = arith.constant 12 : i32
      %21 = vector.broadcast %c12_i32 : i32 to vector<2x16xi32>
      %22 = arith.cmpi sge, %20, %21 : vector<2x16xi32>
      %cst_17 = arith.constant 0.000000e+00 : f32
      %23 = vector.broadcast %cst_17 : f32 to vector<2x16xf32>
      %24 = arith.select %22, %19, %23 : vector<2x16xi1>, vector<2x16xf32>
      %cst_18 = arith.constant -1.000000e+00 : f32
      %25 = vector.broadcast %cst_18 : f32 to vector<2x16xf32>
      %26 = arith.select %22, %24, %25 : vector<2x16xi1>, vector<2x16xf32>
      %cst_19 = arith.constant 0.000000e+00 : f32
      %27 = vector.broadcast %cst_19 : f32 to vector<2x16xf32>
      %c0_i32_20 = arith.constant 0 : i32
      %cst_21 = arith.constant dense<0xFF800000> : vector<2xf32>
      %28 = vector.multi_reduction <maximumf>, %26, %cst_21 [1] : vector<2x16xf32> to vector<2xf32>
      %29 = vector.shape_cast %28 : vector<2xf32> to vector<2x1xf32>
      %30 = vector.broadcast %29 : vector<2x1xf32> to vector<2x16xf32>
      %31 = arith.cmpf oeq, %26, %30 : vector<2x16xf32>
      %c16_i32 = arith.constant 16 : i32
      %32 = vector.broadcast %c16_i32 : i32 to vector<2x16xi32>
      %33 = arith.select %31, %20, %32 : vector<2x16xi1>, vector<2x16xi32>
      %cst_22 = arith.constant dense<2147483647> : vector<2xi32>
      %34 = vector.multi_reduction <minsi>, %33, %cst_22 [1] : vector<2x16xi32> to vector<2xi32>
      %35 = vector.shape_cast %34 : vector<2xi32> to vector<2x1xi32>
      %36 = vector.broadcast %35 : vector<2x1xi32> to vector<2x16xi32>
      %37 = arith.cmpi eq, %20, %36 : vector<2x16xi32>
      %38 = arith.select %37, %24, %27 : vector<2x16xi1>, vector<2x16xf32>
      %cst_23 = arith.constant -1.000000e+00 : f32
      %39 = vector.broadcast %cst_23 : f32 to vector<2x16xf32>
      %40 = arith.select %37, %39, %26 : vector<2x16xi1>, vector<2x16xf32>
      %cst_24 = arith.constant dense<0.000000e+00> : vector<2xf32>
      %41 = vector.multi_reduction <add>, %38, %cst_24 [1] : vector<2x16xf32> to vector<2xf32>
      %42 = vector.shape_cast %41 : vector<2xf32> to vector<2x1xf32>
      %cst_25 = arith.constant 9.99999996E-13 : f32
      %43 = vector.broadcast %cst_25 : f32 to vector<2x1xf32>
      %44 = arith.addf %42, %43 : vector<2x1xf32>
      %45 = vector.broadcast %44 : vector<2x1xf32> to vector<2x16xf32>
      %46 = arith.divf %38, %45 : vector<2x16xf32>
      %cst_26 = arith.constant 1.600000e+01 : f32
      %47 = vector.broadcast %cst_26 : f32 to vector<2x16xf32>
      %48 = arith.mulf %46, %47 : vector<2x16xf32>
      %c0_27 = arith.constant 0 : index
      %c0_28 = arith.constant 0 : index
      %49 = vector.load %arg5[%c0_27, %c0_28] : memref<2x16xf32, #tpu.memory_space<vmem>>, vector<2x16xf32>
      tpu.vector_store %arg5[%c0_27, %c0_28], %48 {strides = array<i32>} : memref<2x16xf32, #tpu.memory_space<vmem>>, vector<2x16xf32>,
    } else {
    }
    return
  }
  func.func @transform_0(%arg0: i32, %arg1: i32) -> (i32, i32, i32) {
    %c0_i32 = arith.constant 0 : i32
    %c0_i32_0 = arith.constant 0 : i32
    return %arg0, %c0_i32, %arg1 : i32, i32, i32
  }
  func.func @transform_1(%arg0: i32, %arg1: i32) -> (i32, i32) {
    %c0_i32 = arith.constant 0 : i32
    %c0_i32_0 = arith.constant 0 : i32
    %c0_i32_1 = arith.constant 0 : i32
    return %c0_i32, %c0_i32_0 : i32, i32
  }
  func.func @transform_2(%arg0: i32, %arg1: i32) -> (i32, i32) {
    %c0_i32 = arith.constant 0 : i32
    %c0_i32_0 = arith.constant 0 : i32
    %c0_i32_1 = arith.constant 0 : i32
    return %c0_i32, %c0_i32_0 : i32, i32
  }
  func.func @transform_3(%arg0: i32, %arg1: i32) -> (i32, i32) {
    %c0_i32 = arith.constant 0 : i32
    %c0_i32_0 = arith.constant 0 : i32
    return %arg0, %c0_i32 : i32, i32
  }
}

</mosaic_0001>

<llo_original>
// kernel: tpu_custom_call.1
$region0: #{tpu_custom_call.1}
  #allocation0 [shape = 'u32[]', space=smem, size = 0x4, offset = 0x4, fixed_abs, tag = 'smem constant byte address 0x4 - core index']
  #allocation1 [shape = 'u32[144,128]{1,0:T(1,128)}', space=vmem, size = 0x12000, scoped, tag = 'internal scratch']
  #allocation2 [shape = 'f32[2,16]{1,0:T(2,128)}', space=vmem, size = 0x400, scoped, tag = 'scratch operand']
  %s0 = inlined_call_operand.hbm [shape: f32[2,16,256], index: 0, kind: input, shape index: {}]
  %s1 = inlined_call_operand.hbm [shape: f32[16,16], index: 1, kind: input, shape index: {}]
  %s2 = inlined_call_operand.vmem [shape: f32[1,16], index: 2, kind: input, shape index: {}]
  %s3 = inlined_call_operand.hbm [shape: f32[2,16], index: 3, kind: output, shape index: {}]
  %s4 = sld [smem:[#allocation0]]
  $region38: #{tpu_custom_call.1} parent=0
    _
  %s6 = ssub.s32 1, %s4
  %s7 = scalar_select 0, %s6, %s4
  $region1: #{tpu_custom_call.1} parent=0
    #allocation3 [shape = 'u8[32768]{0}', space=vmem, size = 0x8000, scoped, tag = 'input window, operand 0, single buffered']
    #allocation4 [shape = 's32[1]{0}', space=sflag, size = 0x4, scoped, tag = 'scoped memory for tpu_custom_call.1']
    #allocation5 [shape = 's32[1]{0}', space=sflag, size = 0x4, scoped, tag = 'scoped memory for tpu_custom_call.1']
    #allocation6 [shape = 'u8[8192]{0}', space=vmem, size = 0x2000, scoped, tag = 'input window, operand 1, single buffered']
    #allocation7 [shape = 's32[1]{0}', space=sflag, size = 0x4, scoped, tag = 'scoped memory for tpu_custom_call.1']
    #allocation8 [shape = 'u8[1024]{0}', space=vmem, size = 0x400, scoped, tag = 'output window, operand 0, single buffered']
    %8 = vsyncpa [#allocation4], 0
    %9 = vsyncpa [#allocation7], 0
    %10 = vsyncpa [#allocation5], 0
    // Predicated region
    $region2: #{tpu_custom_call.1} parent=1 // pred_check
      _
    $region3: #{tpu_custom_call.1} parent=1 // pred_check_branch
      %12 = sbr.rel (0) target = $region5
    $region4: #{tpu_custom_call.1} parent=1 // pred_region
      %s14 = ssub.s32 1024, 1024
      %15 = vsyncadd [#allocation4], %s14
      %s16 = sshll.u32 [#allocation3], 4
      %s17 = int_to_ptr.vmem [resolvable:$true] %s16
      %22 = dma.hbm_to_vmem [thread:$0]  %s0, 1024, %s17, [#allocation4], 256, 256, 16
    $region5: #{tpu_custom_call.1} parent=1 // pred_fallthru
      _
    // Predicated region
    $region6: #{tpu_custom_call.1} parent=1 // pred_check
      _
    $region7: #{tpu_custom_call.1} parent=1 // pred_check_branch
      %24 = sbr.rel (0) target = $region9
    $region8: #{tpu_custom_call.1} parent=1 // pred_region
      %s26 = ssub.s32 256, 256
      %27 = vsyncadd [#allocation7], %s26
      %s28 = sshll.u32 [#allocation6], 4
      %s29 = int_to_ptr.vmem [resolvable:$true] %s28
      %34 = dma.hbm_to_vmem [thread:$0]  %s1, 256, %s29, [#allocation7], 128, 128, 8
    $region9: #{tpu_custom_call.1} parent=1 // pred_fallthru
      _
    // Predicated region
    $region10: #{tpu_custom_call.1} parent=1 // pred_check
      _
    $region11: #{tpu_custom_call.1} parent=1 // pred_check_branch
      %36 = sbr.rel (0) target = $region13
    $region12: #{tpu_custom_call.1} parent=1 // pred_region
      _
    $region13: #{tpu_custom_call.1} parent=1 // pred_fallthru
      _
    // Predicated region
    $region14: #{tpu_custom_call.1} parent=1 // pred_check
      _
    $region15: #{tpu_custom_call.1} parent=1 // pred_check_branch
      %38 = sbr.rel (0) target = $region17
    $region16: #{tpu_custom_call.1} parent=1 // pred_region
      %39 = dma.done [#allocation4], 1024
    $region17: #{tpu_custom_call.1} parent=1 // pred_fallthru
      _
    // Predicated region
    $region18: #{tpu_custom_call.1} parent=1 // pred_check
      _
    $region19: #{tpu_custom_call.1} parent=1 // pred_check_branch
      %41 = sbr.rel (0) target = $region21
    $region20: #{tpu_custom_call.1} parent=1 // pred_region
      %42 = dma.done [#allocation7], 256
    $region21: #{tpu_custom_call.1} parent=1 // pred_fallthru
      _
    %p43 = scmp.eq.s32.totalorder 0, 0
    // Predicated region
    $region22: #{tpu_custom_call.1} parent=1 // pred_check
      %p44 = pneg %p43
    $region23: #{tpu_custom_call.1} parent=1 // pred_check_branch
      %46 = sbr.rel (%p44) target = $region25
    $region24: #{tpu_custom_call.1} parent=1 // pred_region
      %vm47 = vcmask 123904
      %48 = vst.msk [vmem:[#allocation2] sm:$0x3] %vm47, 0.0
    $region25: #{tpu_custom_call.1} parent=1 // pred_fallthru
      _
    %v49 = vld [vmem:[#allocation2] sm:$0x3]
    %v50 = vld [vmem:[#allocation3] sm:$0xff]
    %v51 = vld [vmem:[#allocation3 + $0x8] sm:$0xff]
    %v52 = vld [vmem:[#allocation3 + $0x10] sm:$0xff]
    %v53 = vld [vmem:[#allocation3 + $0x18] sm:$0xff]
    %v54 = vld [vmem:[#allocation3 + $0x20] sm:$0xff]
    %v55 = vld [vmem:[#allocation3 + $0x28] sm:$0xff]
    %v56 = vld [vmem:[#allocation3 + $0x30] sm:$0xff]
    %v57 = vld [vmem:[#allocation3 + $0x38] sm:$0xff]
    %v58 = vand.u32 2147483647, %v50
    %v59 = vand.u32 2147483647, %v51
    %v60 = vand.u32 2147483647, %v52
    %v61 = vand.u32 2147483647, %v53
    %v62 = vand.u32 2147483647, %v54
    %v63 = vand.u32 2147483647, %v55
    %v64 = vand.u32 2147483647, %v56
    %v65 = vand.u32 2147483647, %v57
    %v66 = vadd.f32 %v58, %v59
    %67 = vadd.xlane.f32.xlu0 %v66
    %v68 = vpop.xlane.xlu0 %67
    %v69 = vadd.f32 %v60, %v61
    %70 = vadd.xlane.f32.xlu0 %v69
    %v71 = vpop.xlane.xlu0 %70
    %v72 = vadd.f32 %v62, %v63
    %73 = vadd.xlane.f32.xlu0 %v72
    %v74 = vpop.xlane.xlu0 %73
    %v75 = vadd.f32 %v64, %v65
    %76 = vadd.xlane.f32.xlu0 %v75
    %v77 = vpop.xlane.xlu0 %76
    %v82 = vlaneseq
    %v83 = vand.u32 %v82, 127
    %v84 = vlaneseq
    %v85 = vshrl.u32 %v84, 7
    %v86 = vsub.s32 %v83, %v85
    %v87 = vrot.slane %v68, %v86
    %v88 = vadd.s32 %v83, 4294967288
    %v89 = vlaneseq
    %v90 = vshrl.u32 %v89, 7
    %v91 = vsub.s32 %v88, %v90
    %v92 = vrot.slane %v71, %v91
    %vm93 = vcmask 130112
    %v94 = vsel %vm93, %v92, %v87
    %v95 = vlaneseq
    %v96 = vshrl.u32 %v95, 7
    %v97 = vsub.s32 %v83, %v96
    %v98 = vrot.slane %v74, %v97
    %v99 = vlaneseq
    %v100 = vshrl.u32 %v99, 7
    %v101 = vsub.s32 %v88, %v100
    %v102 = vrot.slane %v77, %v101
    %v103 = vsel %vm93, %v102, %v98
    %vm104 = vcmask 1041409
    %v105 = vsel %vm104, %v103, %v94
    %v107 = vadd.f32 %v49, %v105
    %vm108 = vcmask 123904
    %109 = vst.msk [vmem:[#allocation2] sm:$0x3] %vm108, %v107
    // Predicated region
    $region26: #{tpu_custom_call.1} parent=1 // pred_check
      %p110 = pneg %p43
    $region27: #{tpu_custom_call.1} parent=1 // pred_check_branch
      %112 = sbr.rel (%p110) target = $region29
    $region28: #{tpu_custom_call.1} parent=1 // pred_region
      %v113 = vld [vmem:[#allocation2] sm:$0x3]
      %v114 = vld [vmem:[#allocation6] sm:$0xff]
      %v115 = vld [vmem:[#allocation6 + $0x8] sm:$0xff]
      %v116 = vld [vmem:[%s2] sm:$0x1]
      %v118 = vlaneseq
      %v119 = vshrl.u32 %v118, 7
      %v120 = vsub.s32 0, %v119
      %v121 = vrot.slane %v116, %v120
      %vm123 = vcmask 130048
      %v125 = vsel %vm123, %v113, 0
      %127 = vmatprep.subr.mxu0 0.0
      %128 = vmatpush1.msra.mxu0 %v114
      %129 = vmatprep.subr.mxu0 0.0
      %130 = vmatpush1.msra.mxu0 %v115
      %131 = vmatprep.subr.mxu0 0.0
      %132 = vmatpush1.msra.mxu0 0.0
      %133 = vmatprep.subr.mxu0 0.0
      %134 = vmatpush1.msra.mxu0 0.0
      %135 = vmatprep.subr.mxu0 0.0
      %136 = vmatpush1.msra.mxu0 0.0
      %137 = vmatprep.subr.mxu0 0.0
      %138 = vmatpush1.msra.mxu0 0.0
      %139 = vmatprep.subr.mxu0 0.0
      %140 = vmatpush1.msra.mxu0 0.0
      %141 = vmatprep.subr.mxu0 0.0
      %142 = vmatpush1.msra.mxu0 0.0
      %143 = vmatprep.subr.mxu0 0.0
      %144 = vmatpush1.msra.mxu0 0.0
      %145 = vmatprep.subr.mxu0 0.0
      %146 = vmatpush1.msra.mxu0 0.0
      %147 = vmatprep.subr.mxu0 0.0
      %148 = vmatpush1.msra.mxu0 0.0
      %149 = vmatprep.subr.mxu0 0.0
      %150 = vmatpush1.msra.mxu0 0.0
      %151 = vmatprep.subr.mxu0 0.0
      %152 = vmatpush1.msra.mxu0 0.0
      %153 = vmatprep.subr.mxu0 0.0
      %154 = vmatpush1.msra.mxu0 0.0
      %155 = vmatprep.subr.mxu0 0.0
      %156 = vmatpush1.msra.mxu0 0.0
      %157 = vmatprep.subr.mxu0 0.0
      %158 = vmatpush1.msra.mxu0 0.0
      %159 = vmatprep.subr.mxu0 0.0
      %160 = vmatpush1.msra.mxu0 0.0
      %161 = vmatprep.subr.mxu0 0.0
      %162 = vmatpush1.msra.mxu0 0.0
      %163 = vmatprep.subr.mxu0 0.0
      %164 = vmatpush1.msra.mxu0 0.0
      %165 = vmatprep.subr.mxu0 0.0
      %166 = vmatpush1.msra.mxu0 0.0
      %167 = vmatprep.subr.mxu0 0.0
      %168 = vmatpush1.msra.mxu0 0.0
      %169 = vmatprep.subr.mxu0 0.0
      %170 = vmatpush1.msra.mxu0 0.0
      %171 = vmatprep.subr.mxu0 0.0
      %172 = vmatpush1.msra.mxu0 0.0
      %173 = vmatprep.subr.mxu0 0.0
      %174 = vmatpush1.msra.mxu0 0.0
      %175 = vmatprep.subr.mxu0 0.0
      %176 = vmatpush1.msra.mxu0 0.0
      %177 = vmatprep.subr.mxu0 0.0
      %178 = vmatpush1.msra.mxu0 0.0
      %179 = vmatprep.subr.mxu0 0.0
      %180 = vmatpush1.msra.mxu0 0.0
      %181 = vmatprep.subr.mxu0 0.0
      %182 = vmatpush1.msra.mxu0 0.0
      %183 = vmatprep.subr.mxu0 0.0
      %184 = vmatpush1.msra.mxu0 0.0
      %185 = vmatprep.subr.mxu0 0.0
      %186 = vmatpush1.msra.mxu0 0.0
      %187 = vmatprep.subr.mxu0 0.0
      %188 = vmatpush1.msra.mxu0 0.0
      %189 = vmatprep.subr.mxu0 0.0
      %190 = vmatpush1.msra.mxu0 0.0
      %191 = vmatprep.mubr.f32.mxu0 0.0
      %192 = vmatmul.mubr.f32.gmra.mrb[0].mxu0 %v125
      %v193 = vpop.f32.mrb[0].mxu0
      %v194 = vadd.f32 %v121, %v193
      %v195 = vpop.f32.mrb[0].mxu0
      %196 = vdwg.mxu0
      %v197 = vmax.f32 %v194, 0.0
      %vm198 = vcmp.ge.s32.totalorder %v83, 12
      %v199 = vsel %vm198, %v197, 0.0
      %v200 = vsel %vm198, %v197, -1.0
      %v201 = vsel %vm108, %v200, -inf
      %202 = vmax.xlane.f32.xlu0 %v201
      %v203 = vpop.xlane.xlu0 %202
      %vm204 = vcmp.eq.f32.partialorder %v200, %v203
      %v205 = vsel %vm204, %v83, 16
      %v206 = vsel %vm108, %v205, 2147483647
      %v207 = vand.u32 %v206, 65535
      %v208 = vshra.s32 %v206, 16
      %v209 = vcvt.s32.f32 %v207
      %v210 = vcvt.s32.f32 %v208
      %211 = vmin.xlane.f32.xlu0 %v210
      %v212 = vpop.xlane.xlu0 %211
      %vm213 = vcmp.eq.f32.partialorder %v210, %v212
      %v214 = vsel %vm213, %v209, inf
      %215 = vmin.xlane.f32.xlu0 %v214
      %v216 = vpop.xlane.xlu0 %215
      %v217 = vcvt.f32.s32 %v216
      %v218 = vcvt.f32.s32 %v212
      %v219 = vshll.u32 %v218, 16
      %v220 = vadd.s32 %v219, %v217
      %vm221 = vcmp.eq.s32.totalorder %v83, %v220
      %v222 = vsel %vm221, %v199, 0.0
      %v223 = vsel %vm108, %v222, 0.0
      %224 = vadd.xlane.f32.xlu0 %v223
      %v225 = vpop.xlane.xlu0 %224
      %v226 = vadd.f32 %v225, 1e-12
      %v227 = vrcp.pop %v226
      %v228 = vmul.f32 %v222, %v227
      %v229 = vmul.f32 %v228, 16.0
      %230 = vst.msk [vmem:[#allocation8] sm:$0x3] %vm108, %v229
    $region29: #{tpu_custom_call.1} parent=1 // pred_fallthru
      _
    // Predicated region
    $region30: #{tpu_custom_call.1} parent=1 // pred_check
      _
    $region31: #{tpu_custom_call.1} parent=1 // pred_check_branch
      %232 = sbr.rel (0) target = $region33
    $region32: #{tpu_custom_call.1} parent=1 // pred_region
      %s234 = ssub.s32 32, 32
      %235 = vsyncadd [#allocation5], %s234
      %s237 = sshll.u32 [#allocation8], 4
      %s238 = int_to_ptr.vmem [resolvable:$true] %s237
      %240 = dma.vmem_to_hbm [thread:$0]  %s238, 32, %s3, [#allocation5]
    $region33: #{tpu_custom_call.1} parent=1 // pred_fallthru
      _
    // Predicated region
    $region34: #{tpu_custom_call.1} parent=1 // pred_check
      _
    $region35: #{tpu_custom_call.1} parent=1 // pred_check_branch
      %242 = sbr.rel (0) target = $region37
    $region36: #{tpu_custom_call.1} parent=1 // pred_region
      %243 = dma.done [#allocation5], 32
    $region37: #{tpu_custom_call.1} parent=1 // pred_fallthru
      _
    %244 = vsyncpa [#allocation4], 1
    %245 = vsyncpa [#allocation7], 1
    %246 = vsyncpa [#allocation5], 1

</llo_original>
